<compile_context>
chip_gen: v6e
topology: v6e:2x2x1
jax: 0.10.0
libtpu: 0.0.40
codegen_flags: <defaults>
</compile_context>

<pallas_src>
import jax
import jax.numpy as jnp
from jax.experimental import pallas as pl
from jax.experimental.pallas import tpu as pltpu

# ---- static problem sizes (small, consistent with the module) -------------
N = 64                    # number of points (batch dim of BatchNorm1d / Linear)
K0_DIM = 72               # self.k0s[0].get_dim()  (stand-in, PlaneGrid not given)
CTX_DIM = 71              # hard-coded 71 in CTX_models
OUT_DIM = 32              # out_dim[0]
OUT_PAD = 128             # lane-dense padded output width (kernel store width)
BN_EPS = 1e-5


def _fused_forward_kernel(feat_ref, ctx_ref, w0_ref, w1_ref, b_ref, out_ref):
    """Fused training-mode BN (batch stats) + two MXU dots into one padded tile.

    feat_ref : (N, K0_DIM)    level-0 plane features
    ctx_ref  : (N, CTX_DIM)   context features (g_fea)
    w0_ref   : (K0_DIM, OUT_PAD)  gamma0-folded weight, cols [0:OUT_DIM] live
    w1_ref   : (CTX_DIM, OUT_PAD) gamma1-folded weight, cols [OUT_DIM:2*OUT_DIM] live
    b_ref    : (1, OUT_PAD)   beta@W + b folded bias, zero-padded
    out_ref  : (N, OUT_PAD)   cols [0:2*OUT_DIM] are the real result
    """
    inv_n = jnp.float32(1.0 / N)

    def bn(x):
        # Two-pass batch-norm (biased variance), matching torch BN in training.
        mean = jnp.sum(x, axis=0, keepdims=True) * inv_n
        xc = x - mean
        var = jnp.sum(xc * xc, axis=0, keepdims=True) * inv_n
        return xc * jax.lax.rsqrt(var + BN_EPS)      # gamma/beta folded into W,b

    xn0 = bn(feat_ref[...])                          # (N, K0_DIM)
    xn1 = bn(ctx_ref[...])                           # (N, CTX_DIM)

    # Two MXU passes accumulating into the same (N, 128) tile; the output is
    # already [rr | rrr | 0-pad] thanks to the disjoint live columns of w0/w1.
    out = jnp.dot(xn0, w0_ref[...], preferred_element_type=jnp.float32)
    out = out + jnp.dot(xn1, w1_ref[...], preferred_element_type=jnp.float32)
    out_ref[...] = out + b_ref[...]                  # full-width lane-dense store


def fold_params(params):
    """Fold BN affine (gamma, beta) and Linear bias into padded W0', W1', b'."""
    w0 = jnp.zeros((K0_DIM, OUT_PAD), jnp.float32)
    w0 = w0.at[:, :OUT_DIM].set(params["gamma0"].reshape(-1, 1) * params["w0"])

    w1 = jnp.zeros((CTX_DIM, OUT_PAD), jnp.float32)
    w1 = w1.at[:, OUT_DIM:2 * OUT_DIM].set(params["gamma1"].reshape(-1, 1) * params["w1"])

    b = jnp.zeros((1, OUT_PAD), jnp.float32)
    b = b.at[:, :OUT_DIM].set(params["beta0"] @ params["w0"] + params["b0"])
    b = b.at[:, OUT_DIM:2 * OUT_DIM].set(params["beta1"] @ params["w1"] + params["b1"])
    return w0, w1, b


def feature_planes_forward(feat, g_fea, params):
    """Wrapper: fold params, single grid-less pallas_call, slice padded cols off."""
    w0, w1, b = fold_params(params)

    vmem = pl.BlockSpec(memory_space=pltpu.MemorySpace.VMEM)
    out_pad = pl.pallas_call(
        _fused_forward_kernel,
        out_shape=jax.ShapeDtypeStruct((N, OUT_PAD), jnp.float32),
        in_specs=[vmem, vmem, vmem, vmem, vmem],
        out_specs=vmem,
        compiler_params=pltpu.CompilerParams(),
    )(feat, g_fea, w0, w1, b)
    return out_pad[:, :2 * OUT_DIM]                  # (N, 2*OUT_DIM)


def _reference_forward(feat, g_fea, params):
    """Pure-JAX reference mirroring PyTorch semantics (unfused branches)."""
    def bn_linear(x, gamma, beta, w, b):
        mean = jnp.mean(x, axis=0, keepdims=True)
        var = jnp.mean((x - mean) ** 2, axis=0, keepdims=True)  # biased, as torch BN
        xn = (x - mean) / jnp.sqrt(var + BN_EPS) * gamma + beta
        return xn @ w + b

    rr = bn_linear(feat, params["gamma0"], params["beta0"], params["w0"], params["b0"])
    rrr = bn_linear(g_fea, params["gamma1"], params["beta1"], params["w1"], params["b1"])
    return jnp.concatenate([rr, rrr], axis=-1)


def init_params(key):
    k = jax.random.split(key, 4)
    params = {
        # Linear weights stored as (in, out); PyTorch stores (out, in) — transposed here.
        "w0": jax.random.normal(k[0], (K0_DIM, OUT_DIM), jnp.float32) * 0.05,
        "b0": jax.random.normal(k[1], (1, OUT_DIM), jnp.float32) * 0.01,
        "gamma0": jnp.ones((1, K0_DIM), jnp.float32),     # BatchNorm1d default init
        "beta0": jnp.zeros((1, K0_DIM), jnp.float32),
        "w1": jax.random.normal(k[2], (CTX_DIM, OUT_DIM), jnp.float32) * 0.05,
        "b1": jax.random.normal(k[3], (1, OUT_DIM), jnp.float32) * 0.01,
        "gamma1": jnp.ones((1, CTX_DIM), jnp.float32),
        "beta1": jnp.zeros((1, CTX_DIM), jnp.float32),
    }
    return params


if __name__ == "__main__":
    key = jax.random.PRNGKey(0)
    kx, kf, kg, kp = jax.random.split(key, 4)

    # x: 3D points (only consumed by the undefined PlaneGrid, kept for fidelity)
    x = jax.random.uniform(kx, (N, 3), jnp.float32)
    # feat: stand-in for self.k0s[0](x, Q) output, dim = k0s[0].get_dim()
    feat = jax.random.normal(kf, (N, K0_DIM), jnp.float32)
    # g_fea: context features, BatchNorm1d(71) input
    g_fea = jax.random.normal(kg, (N, CTX_DIM), jnp.float32)

    params = init_params(kp)

    out = feature_planes_forward(feat, g_fea, params)
    out = jax.block_until_ready(out)

    ref = _reference_forward(feat, g_fea, params)
    assert out.shape == (N, 2 * OUT_DIM), out.shape
    assert jnp.allclose(out, ref, atol=1e-4, rtol=1e-4), "mismatch vs reference"

    print("KERNEL_OK")
</pallas_src>

<mosaic_0001>
module attributes {stable_mosaic.version = 11 : i64} {
  func.func @_fused_forward_kernel(%arg0: memref<64x72xf32, #tpu.memory_space<vmem>>, %arg1: memref<64x71xf32, #tpu.memory_space<vmem>>, %arg2: memref<72x128xf32, #tpu.memory_space<vmem>>, %arg3: memref<71x128xf32, #tpu.memory_space<vmem>>, %arg4: memref<1x128xf32, #tpu.memory_space<vmem>>, %arg5: memref<64x128xf32, #tpu.memory_space<vmem>>) attributes {dimension_semantics = [], scalar_prefetch = 0 : i64, scratch_operands = 0 : i64, tpu.core_type = #tpu.core_type<tc>} {
    %c0 = arith.constant 0 : index
    %c0_0 = arith.constant 0 : index
    %0 = vector.load %arg0[%c0, %c0_0] : memref<64x72xf32, #tpu.memory_space<vmem>>, vector<64x72xf32>
    %cst = arith.constant dense<0.000000e+00> : vector<72xf32>
    %1 = vector.multi_reduction <add>, %0, %cst [0] : vector<64x72xf32> to vector<72xf32>
    %2 = vector.shape_cast %1 : vector<72xf32> to vector<1x72xf32>
    %cst_1 = arith.constant 1.562500e-02 : f32
    %3 = vector.broadcast %cst_1 : f32 to vector<1x72xf32>
    %4 = arith.mulf %2, %3 : vector<1x72xf32>
    %5 = vector.broadcast %4 : vector<1x72xf32> to vector<64x72xf32>
    %6 = arith.subf %0, %5 : vector<64x72xf32>
    %7 = arith.mulf %6, %6 : vector<64x72xf32>
    %cst_2 = arith.constant dense<0.000000e+00> : vector<72xf32>
    %8 = vector.multi_reduction <add>, %7, %cst_2 [0] : vector<64x72xf32> to vector<72xf32>
    %9 = vector.shape_cast %8 : vector<72xf32> to vector<1x72xf32>
    %cst_3 = arith.constant 1.562500e-02 : f32
    %10 = vector.broadcast %cst_3 : f32 to vector<1x72xf32>
    %11 = arith.mulf %9, %10 : vector<1x72xf32>
    %cst_4 = arith.constant 9.99999974E-6 : f32
    %12 = vector.broadcast %cst_4 : f32 to vector<1x72xf32>
    %13 = arith.addf %11, %12 : vector<1x72xf32>
    %14 = math.rsqrt %13 : vector<1x72xf32>
    %15 = vector.broadcast %14 : vector<1x72xf32> to vector<64x72xf32>
    %16 = arith.mulf %6, %15 : vector<64x72xf32>
    %c0_5 = arith.constant 0 : index
    %c0_6 = arith.constant 0 : index
    %17 = vector.load %arg1[%c0_5, %c0_6] : memref<64x71xf32, #tpu.memory_space<vmem>>, vector<64x71xf32>
    %cst_7 = arith.constant dense<0.000000e+00> : vector<71xf32>
    %18 = vector.multi_reduction <add>, %17, %cst_7 [0] : vector<64x71xf32> to vector<71xf32>
    %19 = vector.shape_cast %18 : vector<71xf32> to vector<1x71xf32>
    %cst_8 = arith.constant 1.562500e-02 : f32
    %20 = vector.broadcast %cst_8 : f32 to vector<1x71xf32>
    %21 = arith.mulf %19, %20 : vector<1x71xf32>
    %22 = vector.broadcast %21 : vector<1x71xf32> to vector<64x71xf32>
    %23 = arith.subf %17, %22 : vector<64x71xf32>
    %24 = arith.mulf %23, %23 : vector<64x71xf32>
    %cst_9 = arith.constant dense<0.000000e+00> : vector<71xf32>
    %25 = vector.multi_reduction <add>, %24, %cst_9 [0] : vector<64x71xf32> to vector<71xf32>
    %26 = vector.shape_cast %25 : vector<71xf32> to vector<1x71xf32>
    %cst_10 = arith.constant 1.562500e-02 : f32
    %27 = vector.broadcast %cst_10 : f32 to vector<1x71xf32>
    %28 = arith.mulf %26, %27 : vector<1x71xf32>
    %cst_11 = arith.constant 9.99999974E-6 : f32
    %29 = vector.broadcast %cst_11 : f32 to vector<1x71xf32>
    %30 = arith.addf %28, %29 : vector<1x71xf32>
    %31 = math.rsqrt %30 : vector<1x71xf32>
    %32 = vector.broadcast %31 : vector<1x71xf32> to vector<64x71xf32>
    %33 = arith.mulf %23, %32 : vector<64x71xf32>
    %c0_12 = arith.constant 0 : index
    %c0_13 = arith.constant 0 : index
    %34 = vector.load %arg2[%c0_12, %c0_13] : memref<72x128xf32, #tpu.memory_space<vmem>>, vector<72x128xf32>
    %cst_14 = arith.constant dense<0.000000e+00> : vector<64x128xf32>
    %35 = tpu.matmul %16, %34, %cst_14 {dimension_numbers = #tpu.dot_dimension_numbers<[1], [0], [0], [1], [0, 0, 1, 1], [], []>} : vector<64x72xf32>, vector<72x128xf32>, vector<64x128xf32> -> vector<64x128xf32>
    %c0_15 = arith.constant 0 : index
    %c0_16 = arith.constant 0 : index
    %36 = vector.load %arg3[%c0_15, %c0_16] : memref<71x128xf32, #tpu.memory_space<vmem>>, vector<71x128xf32>
    %cst_17 = arith.constant dense<0.000000e+00> : vector<64x128xf32>
    %37 = tpu.matmul %33, %36, %cst_17 {dimension_numbers = #tpu.dot_dimension_numbers<[1], [0], [0], [1], [0, 0, 1, 1], [], []>} : vector<64x71xf32>, vector<71x128xf32>, vector<64x128xf32> -> vector<64x128xf32>
    %38 = arith.addf %35, %37 : vector<64x128xf32>
    %c0_18 = arith.constant 0 : index
    %c0_19 = arith.constant 0 : index
    %39 = vector.load %arg4[%c0_18, %c0_19] : memref<1x128xf32, #tpu.memory_space<vmem>>, vector<1x128xf32>
    %40 = vector.broadcast %39 : vector<1x128xf32> to vector<64x128xf32>
    %41 = arith.addf %38, %40 : vector<64x128xf32>
    %c0_20 = arith.constant 0 : index
    %c0_21 = arith.constant 0 : index
    %42 = vector.load %arg5[%c0_20, %c0_21] : memref<64x128xf32, #tpu.memory_space<vmem>>, vector<64x128xf32>
    tpu.vector_store %arg5[%c0_20, %c0_21], %41 {strides = array<i32>} : memref<64x128xf32, #tpu.memory_space<vmem>>, vector<64x128xf32>,
    return
  }
}

</mosaic_0001>

<llo_original>
// kernel: tpu_custom_call.1
$region0: #{tpu_custom_call.1}
  #allocation0 [shape = 'u32[]', space=smem, size = 0x4, offset = 0x4, fixed_abs, tag = 'smem constant byte address 0x4 - core index']
  #allocation1 [shape = 'u32[144,128]{1,0:T(1,128)}', space=vmem, size = 0x12000, scoped, tag = 'internal scratch']
  %s0 = inlined_call_operand.hbm [shape: f32[64,72], index: 0, kind: input, shape index: {}]
  %s1 = inlined_call_operand.hbm [shape: f32[64,71], index: 1, kind: input, shape index: {}]
  %s2 = inlined_call_operand.hbm [shape: f32[72,128], index: 2, kind: input, shape index: {}]
  %s3 = inlined_call_operand.hbm [shape: f32[71,128], index: 3, kind: input, shape index: {}]
  %s4 = inlined_call_operand.vmem [shape: f32[1,128], index: 4, kind: input, shape index: {}]
  %s5 = inlined_call_operand.hbm [shape: f32[64,128], index: 5, kind: output, shape index: {}]
  %s6 = sld [smem:[#allocation0]]
  $region46: #{tpu_custom_call.1} parent=0
    _
  %s8 = ssub.s32 1, %s6
  %s9 = scalar_select 0, %s8, %s6
  $region1: #{tpu_custom_call.1} parent=0
    #allocation2 [shape = 'u8[32768]{0}', space=vmem, size = 0x8000, scoped, tag = 'input window, operand 0, single buffered']
    #allocation3 [shape = 's32[1]{0}', space=sflag, size = 0x4, scoped, tag = 'scoped memory for tpu_custom_call.1']
    #allocation4 [shape = 's32[1]{0}', space=sflag, size = 0x4, scoped, tag = 'scoped memory for tpu_custom_call.1']
    #allocation5 [shape = 'u8[32768]{0}', space=vmem, size = 0x8000, scoped, tag = 'input window, operand 1, single buffered']
    #allocation6 [shape = 's32[1]{0}', space=sflag, size = 0x4, scoped, tag = 'scoped memory for tpu_custom_call.1']
    #allocation7 [shape = 'u8[36864]{0}', space=vmem, size = 0x9000, scoped, tag = 'input window, operand 2, single buffered']
    #allocation8 [shape = 'u8[36864]{0}', space=vmem, size = 0x9000, scoped, tag = 'input window, operand 3, single buffered']
    #allocation9 [shape = 's32[1]{0}', space=sflag, size = 0x4, scoped, tag = 'scoped memory for tpu_custom_call.1']
    #allocation10 [shape = 'u8[32768]{0}', space=vmem, size = 0x8000, scoped, tag = 'output window, operand 0, single buffered']
    %10 = vsyncpa [#allocation3], 0
    %11 = vsyncpa [#allocation6], 0
    %12 = vsyncpa [#allocation9], 0
    %13 = vsyncpa [#allocation4], 0
    // Predicated region
    $region2: #{tpu_custom_call.1} parent=1 // pred_check
      _
    $region3: #{tpu_custom_call.1} parent=1 // pred_check_branch
      %15 = sbr.rel (0) target = $region5
    $region4: #{tpu_custom_call.1} parent=1 // pred_region
      %s17 = ssub.s32 1024, 1024
      %18 = vsyncadd [#allocation3], %s17
      %s19 = sshll.u32 [#allocation2], 4
      %s20 = int_to_ptr.vmem [resolvable:$true] %s19
      %25 = dma.hbm_to_vmem [thread:$0]  %s0, 1024, %s20, [#allocation3], 128, 128, 8
    $region5: #{tpu_custom_call.1} parent=1 // pred_fallthru
      _
    // Predicated region
    $region6: #{tpu_custom_call.1} parent=1 // pred_check
      _
    $region7: #{tpu_custom_call.1} parent=1 // pred_check_branch
      %27 = sbr.rel (0) target = $region9
    $region8: #{tpu_custom_call.1} parent=1 // pred_region
      %s29 = ssub.s32 1024, 1024
      %30 = vsyncadd [#allocation6], %s29
      %s31 = sshll.u32 [#allocation5], 4
      %s32 = int_to_ptr.vmem [resolvable:$true] %s31
      %37 = dma.hbm_to_vmem [thread:$0]  %s1, 1024, %s32, [#allocation6], 128, 128, 8
    $region9: #{tpu_custom_call.1} parent=1 // pred_fallthru
      _
    // Predicated region
    $region10: #{tpu_custom_call.1} parent=1 // pred_check
      _
    $region11: #{tpu_custom_call.1} parent=1 // pred_check_branch
      %39 = sbr.rel (0) target = $region13
    $region12: #{tpu_custom_call.1} parent=1 // pred_region
      %s41 = ssub.s32 1152, 1152
      %42 = vsyncadd [#allocation6], %s41
      %s43 = sshll.u32 [#allocation7], 4
      %s44 = int_to_ptr.vmem [resolvable:$true] %s43
      %49 = dma.hbm_to_vmem [thread:$0]  %s2, 1152, %s44, [#allocation6], 128, 128, 8
    $region13: #{tpu_custom_call.1} parent=1 // pred_fallthru
      _
    // Predicated region
    $region14: #{tpu_custom_call.1} parent=1 // pred_check
      _
    $region15: #{tpu_custom_call.1} parent=1 // pred_check_branch
      %51 = sbr.rel (0) target = $region17
    $region16: #{tpu_custom_call.1} parent=1 // pred_region
      %s53 = ssub.s32 1152, 1152
      %54 = vsyncadd [#allocation9], %s53
      %s55 = sshll.u32 [#allocation8], 4
      %s56 = int_to_ptr.vmem [resolvable:$true] %s55
      %61 = dma.hbm_to_vmem [thread:$0]  %s3, 1152, %s56, [#allocation9], 128, 128, 8
    $region17: #{tpu_custom_call.1} parent=1 // pred_fallthru
      _
    // Predicated region
    $region18: #{tpu_custom_call.1} parent=1 // pred_check
      _
    $region19: #{tpu_custom_call.1} parent=1 // pred_check_branch
      %63 = sbr.rel (0) target = $region21
    $region20: #{tpu_custom_call.1} parent=1 // pred_region
      _
    $region21: #{tpu_custom_call.1} parent=1 // pred_fallthru
      _
    // Predicated region
    $region22: #{tpu_custom_call.1} parent=1 // pred_check
      _
    $region23: #{tpu_custom_call.1} parent=1 // pred_check_branch
      %65 = sbr.rel (0) target = $region25
    $region24: #{tpu_custom_call.1} parent=1 // pred_region
      %66 = dma.done [#allocation3], 1024
    $region25: #{tpu_custom_call.1} parent=1 // pred_fallthru
      _
    // Predicated region
    $region26: #{tpu_custom_call.1} parent=1 // pred_check
      _
    $region27: #{tpu_custom_call.1} parent=1 // pred_check_branch
      %68 = sbr.rel (0) target = $region29
    $region28: #{tpu_custom_call.1} parent=1 // pred_region
      %69 = dma.done [#allocation6], 1024
    $region29: #{tpu_custom_call.1} parent=1 // pred_fallthru
      _
    // Predicated region
    $region30: #{tpu_custom_call.1} parent=1 // pred_check
      _
    $region31: #{tpu_custom_call.1} parent=1 // pred_check_branch
      %71 = sbr.rel (0) target = $region33
    $region32: #{tpu_custom_call.1} parent=1 // pred_region
      %72 = dma.done [#allocation6], 1152
    $region33: #{tpu_custom_call.1} parent=1 // pred_fallthru
      _
    // Predicated region
    $region34: #{tpu_custom_call.1} parent=1 // pred_check
      _
    $region35: #{tpu_custom_call.1} parent=1 // pred_check_branch
      %74 = sbr.rel (0) target = $region37
    $region36: #{tpu_custom_call.1} parent=1 // pred_region
      %75 = dma.done [#allocation9], 1152
    $region37: #{tpu_custom_call.1} parent=1 // pred_fallthru
      _
    %v76 = vld [vmem:[#allocation2] sm:$0xff]
    %v77 = vld [vmem:[#allocation2 + $0x8] sm:$0xff]
    %v78 = vld [vmem:[#allocation2 + $0x10] sm:$0xff]
    %v79 = vld [vmem:[#allocation2 + $0x18] sm:$0xff]
    %v80 = vld [vmem:[#allocation2 + $0x20] sm:$0xff]
    %v81 = vld [vmem:[#allocation2 + $0x28] sm:$0xff]
    %v82 = vld [vmem:[#allocation2 + $0x30] sm:$0xff]
    %v83 = vld [vmem:[#allocation2 + $0x38] sm:$0xff]
    %vm84 = vcmask 588800
    %v85 = vsel %vm84, %v76, 0.0
    %v86 = vsel %vm84, %v77, 0.0
    %v87 = vadd.f32 %v85, %v86
    %v88 = vsel %vm84, %v78, 0.0
    %v89 = vadd.f32 %v87, %v88
    %v90 = vsel %vm84, %v79, 0.0
    %v91 = vadd.f32 %v89, %v90
    %v92 = vsel %vm84, %v80, 0.0
    %v93 = vadd.f32 %v91, %v92
    %v94 = vsel %vm84, %v81, 0.0
    %v95 = vadd.f32 %v93, %v94
    %v96 = vsel %vm84, %v82, 0.0
    %v97 = vadd.f32 %v95, %v96
    %v98 = vsel %vm84, %v83, 0.0
    %v99 = vadd.f32 %v97, %v98
    %v100 = vrot.slane %v99, 4
    %v101 = vadd.f32 %v99, %v100
    %v102 = vrot.slane %v101, 2
    %v103 = vadd.f32 %v101, %v102
    %v104 = vrot.slane %v103, 1
    %v105 = vadd.f32 %v103, %v104
    %v106 = vmul.f32 %v105, 0.015625
    %v107 = vsub.f32 %v76, %v106
    %v108 = vsub.f32 %v77, %v106
    %v109 = vsub.f32 %v78, %v106
    %v110 = vsub.f32 %v79, %v106
    %v111 = vsub.f32 %v80, %v106
    %v112 = vsub.f32 %v81, %v106
    %v113 = vsub.f32 %v82, %v106
    %v114 = vsub.f32 %v83, %v106
    %v115 = vmul.f32 %v107, %v107
    %v116 = vmul.f32 %v108, %v108
    %v117 = vmul.f32 %v109, %v109
    %v118 = vmul.f32 %v110, %v110
    %v119 = vmul.f32 %v111, %v111
    %v120 = vmul.f32 %v112, %v112
    %v121 = vmul.f32 %v113, %v113
    %v122 = vmul.f32 %v114, %v114
    %v123 = vsel %vm84, %v115, 0.0
    %v124 = vsel %vm84, %v116, 0.0
    %v125 = vadd.f32 %v123, %v124
    %v126 = vsel %vm84, %v117, 0.0
    %v127 = vadd.f32 %v125, %v126
    %v128 = vsel %vm84, %v118, 0.0
    %v129 = vadd.f32 %v127, %v128
    %v130 = vsel %vm84, %v119, 0.0
    %v131 = vadd.f32 %v129, %v130
    %v132 = vsel %vm84, %v120, 0.0
    %v133 = vadd.f32 %v131, %v132
    %v134 = vsel %vm84, %v121, 0.0
    %v135 = vadd.f32 %v133, %v134
    %v136 = vsel %vm84, %v122, 0.0
    %v137 = vadd.f32 %v135, %v136
    %v138 = vrot.slane %v137, 4
    %v139 = vadd.f32 %v137, %v138
    %v140 = vrot.slane %v139, 2
    %v141 = vadd.f32 %v139, %v140
    %v142 = vrot.slane %v141, 1
    %v143 = vadd.f32 %v141, %v142
    %v144 = vmul.f32 %v143, 0.015625
    %v145 = vadd.f32 %v144, 1e-05
    %v146 = vrsqrt.pop %v145
    %v147 = vmul.f32 %v107, %v146
    %v148 = vmul.f32 %v108, %v146
    %v149 = vmul.f32 %v109, %v146
    %v150 = vmul.f32 %v110, %v146
    %v151 = vmul.f32 %v111, %v146
    %v152 = vmul.f32 %v112, %v146
    %v153 = vmul.f32 %v113, %v146
    %v154 = vmul.f32 %v114, %v146
    %v155 = vld [vmem:[#allocation5] sm:$0xff]
    %v156 = vld [vmem:[#allocation5 + $0x8] sm:$0xff]
    %v157 = vld [vmem:[#allocation5 + $0x10] sm:$0xff]
    %v158 = vld [vmem:[#allocation5 + $0x18] sm:$0xff]
    %v159 = vld [vmem:[#allocation5 + $0x20] sm:$0xff]
    %v160 = vld [vmem:[#allocation5 + $0x28] sm:$0xff]
    %v161 = vld [vmem:[#allocation5 + $0x30] sm:$0xff]
    %v162 = vld [vmem:[#allocation5 + $0x38] sm:$0xff]
    %vm163 = vcmask 580608
    %v164 = vsel %vm163, %v155, 0.0
    %v165 = vsel %vm163, %v156, 0.0
    %v166 = vadd.f32 %v164, %v165
    %v167 = vsel %vm163, %v157, 0.0
    %v168 = vadd.f32 %v166, %v167
    %v169 = vsel %vm163, %v158, 0.0
    %v170 = vadd.f32 %v168, %v169
    %v171 = vsel %vm163, %v159, 0.0
    %v172 = vadd.f32 %v170, %v171
    %v173 = vsel %vm163, %v160, 0.0
    %v174 = vadd.f32 %v172, %v173
    %v175 = vsel %vm163, %v161, 0.0
    %v176 = vadd.f32 %v174, %v175
    %v177 = vsel %vm163, %v162, 0.0
    %v178 = vadd.f32 %v176, %v177
    %v179 = vrot.slane %v178, 4
    %v180 = vadd.f32 %v178, %v179
    %v181 = vrot.slane %v180, 2
    %v182 = vadd.f32 %v180, %v181
    %v183 = vrot.slane %v182, 1
    %v184 = vadd.f32 %v182, %v183
    %v185 = vmul.f32 %v184, 0.015625
    %v186 = vsub.f32 %v155, %v185
    %v187 = vsub.f32 %v156, %v185
    %v188 = vsub.f32 %v157, %v185
    %v189 = vsub.f32 %v158, %v185
    %v190 = vsub.f32 %v159, %v185
    %v191 = vsub.f32 %v160, %v185
    %v192 = vsub.f32 %v161, %v185
    %v193 = vsub.f32 %v162, %v185
    %v194 = vmul.f32 %v186, %v186
    %v195 = vmul.f32 %v187, %v187
    %v196 = vmul.f32 %v188, %v188
    %v197 = vmul.f32 %v189, %v189
    %v198 = vmul.f32 %v190, %v190
    %v199 = vmul.f32 %v191, %v191
    %v200 = vmul.f32 %v192, %v192
    %v201 = vmul.f32 %v193, %v193
    %v202 = vsel %vm163, %v194, 0.0
    %v203 = vsel %vm163, %v195, 0.0
    %v204 = vadd.f32 %v202, %v203
    %v205 = vsel %vm163, %v196, 0.0
    %v206 = vadd.f32 %v204, %v205
    %v207 = vsel %vm163, %v197, 0.0
    %v208 = vadd.f32 %v206, %v207
    %v209 = vsel %vm163, %v198, 0.0
    %v210 = vadd.f32 %v208, %v209
    %v211 = vsel %vm163, %v199, 0.0
    %v212 = vadd.f32 %v210, %v211
    %v213 = vsel %vm163, %v200, 0.0
    %v214 = vadd.f32 %v212, %v213
    %v215 = vsel %vm163, %v201, 0.0
    %v216 = vadd.f32 %v214, %v215
    %v217 = vrot.slane %v216, 4
    %v218 = vadd.f32 %v216, %v217
    %v219 = vrot.slane %v218, 2
    %v220 = vadd.f32 %v218, %v219
    %v221 = vrot.slane %v220, 1
    %v222 = vadd.f32 %v220, %v221
    %v223 = vmul.f32 %v222, 0.015625
    %v224 = vadd.f32 %v223, 1e-05
    %v225 = vrsqrt.pop %v224
    %v226 = vmul.f32 %v186, %v225
    %v227 = vmul.f32 %v187, %v225
    %v228 = vmul.f32 %v188, %v225
    %v229 = vmul.f32 %v189, %v225
    %v230 = vmul.f32 %v190, %v225
    %v231 = vmul.f32 %v191, %v225
    %v232 = vmul.f32 %v192, %v225
    %v233 = vmul.f32 %v193, %v225
    %v234 = vld [vmem:[#allocation7] sm:$0xff]
    %v235 = vld [vmem:[#allocation7 + $0x8] sm:$0xff]
    %v236 = vld [vmem:[#allocation7 + $0x10] sm:$0xff]
    %v237 = vld [vmem:[#allocation7 + $0x18] sm:$0xff]
    %v238 = vld [vmem:[#allocation7 + $0x20] sm:$0xff]
    %v239 = vld [vmem:[#allocation7 + $0x28] sm:$0xff]
    %v240 = vld [vmem:[#allocation7 + $0x30] sm:$0xff]
    %v241 = vld [vmem:[#allocation7 + $0x38] sm:$0xff]
    %v242 = vld [vmem:[#allocation7 + $0x40] sm:$0xff]
    %v243 = vld [vmem:[#allocation8] sm:$0xff]
    %v244 = vld [vmem:[#allocation8 + $0x8] sm:$0xff]
    %v245 = vld [vmem:[#allocation8 + $0x10] sm:$0xff]
    %v246 = vld [vmem:[#allocation8 + $0x18] sm:$0xff]
    %v247 = vld [vmem:[#allocation8 + $0x20] sm:$0xff]
    %v248 = vld [vmem:[#allocation8 + $0x28] sm:$0xff]
    %v249 = vld [vmem:[#allocation8 + $0x30] sm:$0xff]
    %v250 = vld [vmem:[#allocation8 + $0x38] sm:$0xff]
    %v251 = vld [vmem:[#allocation8 + $0x40] sm:$0x7f]
    %v253 = vsel %vm163, %v226, 0
    %v256 = vsel %vm163, %v227, 0
    %v259 = vsel %vm163, %v228, 0
    %v262 = vsel %vm163, %v229, 0
    %v265 = vsel %vm163, %v230, 0
    %v268 = vsel %vm163, %v231, 0
    %v271 = vsel %vm163, %v232, 0
    %v274 = vsel %vm163, %v233, 0
    %vm276 = vcmask 1046528
    %v278 = vsel %vm276, %v251, 0
    %280 = vmatprep.subr.mxu0 0.0
    %281 = vmatpush1.msra.mxu0 0.0
    %282 = vmatprep.subr.mxu0 0.0
    %283 = vmatpush1.msra.mxu0 0.0
    %284 = vmatprep.subr.mxu0 0.0
    %285 = vmatpush1.msra.mxu0 0.0
    %286 = vmatprep.subr.mxu0 0.0
    %287 = vmatpush1.msra.mxu0 0.0
    %288 = vmatprep.subr.mxu0 0.0
    %289 = vmatpush1.msra.mxu0 0.0
    %290 = vmatprep.subr.mxu0 0.0
    %291 = vmatpush1.msra.mxu0 0.0
    %292 = vmatprep.subr.mxu0 0.0
    %293 = vmatpush1.msra.mxu0 0.0
    %294 = vmatprep.subr.mxu0 0.0
    %295 = vmatpush1.msra.mxu0 %v278
    %296 = vmatprep.subr.mxu0 0.0
    %297 = vmatpush1.msra.mxu0 %v250
    %298 = vmatprep.subr.mxu0 0.0
    %299 = vmatpush1.msra.mxu0 %v249
    %300 = vmatprep.subr.mxu0 0.0
    %301 = vmatpush1.msra.mxu0 %v248
    %302 = vmatprep.subr.mxu0 0.0
    %303 = vmatpush1.msra.mxu0 %v247
    %304 = vmatprep.subr.mxu0 0.0
    %305 = vmatpush1.msra.mxu0 %v246
    %306 = vmatprep.subr.mxu0 0.0
    %307 = vmatpush1.msra.mxu0 %v245
    %308 = vmatprep.subr.mxu0 0.0
    %309 = vmatpush1.msra.mxu0 %v244
    %310 = vmatprep.subr.mxu0 0.0
    %311 = vmatpush1.msra.mxu0 %v243
    %312 = vmatprep.subr.mxu0 0.0
    %313 = vmatpush2.msra.mxu0 0.0
    %314 = vmatprep.subr.mxu0 0.0
    %315 = vmatpush2.msra.mxu0 0.0
    %316 = vmatprep.subr.mxu0 0.0
    %317 = vmatpush2.msra.mxu0 0.0
    %318 = vmatprep.subr.mxu0 0.0
    %319 = vmatpush2.msra.mxu0 0.0
    %320 = vmatprep.subr.mxu0 0.0
    %321 = vmatpush2.msra.mxu0 0.0
    %322 = vmatprep.subr.mxu0 0.0
    %323 = vmatpush2.msra.mxu0 0.0
    %324 = vmatprep.subr.mxu0 0.0
    %325 = vmatpush2.msra.mxu0 0.0
    %326 = vmatprep.subr.mxu0 0.0
    %327 = vmatpush2.msra.mxu0 0.0
    %328 = vmatprep.subr.mxu0 0.0
    %329 = vmatpush2.msra.mxu0 0.0
    %330 = vmatprep.subr.mxu0 0.0
    %331 = vmatpush2.msra.mxu0 0.0
    %332 = vmatprep.subr.mxu0 0.0
    %333 = vmatpush2.msra.mxu0 0.0
    %334 = vmatprep.subr.mxu0 0.0
    %335 = vmatpush2.msra.mxu0 0.0
    %336 = vmatprep.subr.mxu0 0.0
    %337 = vmatpush2.msra.mxu0 0.0
    %338 = vmatprep.subr.mxu0 0.0
    %339 = vmatpush2.msra.mxu0 0.0
    %340 = vmatprep.subr.mxu0 0.0
    %341 = vmatpush2.msra.mxu0 0.0
    %342 = vmatprep.subr.mxu0 0.0
    %343 = vmatpush2.msra.mxu0 0.0
    %344 = vmatprep.mubr.f32.mxu0 0.0
    %345 = vmatmul.mubr.f32.gmra.mxu0 %v253
    %v346 = vpop.f32.mrf.mxu0
    %v347 = vadd.f32 0.0, %v346
    %v348 = vpop.f32.mrf.mxu0
    %349 = vmatprep.mubr.f32.mxu0 0.0
    %350 = vmatmul.mubr.f32.gmra.mxu0 %v256
    %v351 = vpop.f32.mrf.mxu0
    %v352 = vadd.f32 0.0, %v351
    %v353 = vpop.f32.mrf.mxu0
    %354 = vmatprep.mubr.f32.mxu0 0.0
    %355 = vmatmul.mubr.f32.gmra.mxu0 %v259
    %v356 = vpop.f32.mrf.mxu0
    %v357 = vadd.f32 0.0, %v356
    %v358 = vpop.f32.mrf.mxu0
    %359 = vmatprep.mubr.f32.mxu0 0.0
    %360 = vmatmul.mubr.f32.gmra.mxu0 %v262
    %v361 = vpop.f32.mrf.mxu0
    %v362 = vadd.f32 0.0, %v361
    %v363 = vpop.f32.mrf.mxu0
    %364 = vmatprep.mubr.f32.mxu0 0.0
    %365 = vmatmul.mubr.f32.gmra.mxu0 %v265
    %v366 = vpop.f32.mrf.mxu0
    %v367 = vadd.f32 0.0, %v366
    %v368 = vpop.f32.mrf.mxu0
    %369 = vmatprep.mubr.f32.mxu0 0.0
    %370 = vmatmul.mubr.f32.gmra.mxu0 %v268
    %v371 = vpop.f32.mrf.mxu0
    %v372 = vadd.f32 0.0, %v371
    %v373 = vpop.f32.mrf.mxu0
    %374 = vmatprep.mubr.f32.mxu0 0.0
    %375 = vmatmul.mubr.f32.gmra.mxu0 %v271
    %v376 = vpop.f32.mrf.mxu0
    %v377 = vadd.f32 0.0, %v376
    %v378 = vpop.f32.mrf.mxu0
    %379 = vmatprep.mubr.f32.mxu0 0.0
    %380 = vmatmul.mubr.f32.gmra.mxu0 %v274
    %v381 = vpop.f32.mrf.mxu0
    %v382 = vadd.f32 0.0, %v381
    %v383 = vpop.f32.mrf.mxu0
    %384 = vdwg.mxu0
    %v386 = vsel %vm84, %v147, 0
    %v389 = vsel %vm84, %v148, 0
    %v392 = vsel %vm84, %v149, 0
    %v395 = vsel %vm84, %v150, 0
    %v398 = vsel %vm84, %v151, 0
    %v401 = vsel %vm84, %v152, 0
    %v404 = vsel %vm84, %v153, 0
    %v407 = vsel %vm84, %v154, 0
    %409 = vmatprep.subr.mxu0 0.0
    %410 = vmatpush1.msra.mxu0 0.0
    %411 = vmatprep.subr.mxu0 0.0
    %412 = vmatpush1.msra.mxu0 0.0
    %413 = vmatprep.subr.mxu0 0.0
    %414 = vmatpush1.msra.mxu0 0.0
    %415 = vmatprep.subr.mxu0 0.0
    %416 = vmatpush1.msra.mxu0 0.0
    %417 = vmatprep.subr.mxu0 0.0
    %418 = vmatpush1.msra.mxu0 0.0
    %419 = vmatprep.subr.mxu0 0.0
    %420 = vmatpush1.msra.mxu0 0.0
    %421 = vmatprep.subr.mxu0 0.0
    %422 = vmatpush1.msra.mxu0 0.0
    %423 = vmatprep.subr.mxu0 0.0
    %424 = vmatpush1.msra.mxu0 %v242
    %425 = vmatprep.subr.mxu0 0.0
    %426 = vmatpush1.msra.mxu0 %v241
    %427 = vmatprep.subr.mxu0 0.0
    %428 = vmatpush1.msra.mxu0 %v240
    %429 = vmatprep.subr.mxu0 0.0
    %430 = vmatpush1.msra.mxu0 %v239
    %431 = vmatprep.subr.mxu0 0.0
    %432 = vmatpush1.msra.mxu0 %v238
    %433 = vmatprep.subr.mxu0 0.0
    %434 = vmatpush1.msra.mxu0 %v237
    %435 = vmatprep.subr.mxu0 0.0
    %436 = vmatpush1.msra.mxu0 %v236
    %437 = vmatprep.subr.mxu0 0.0
    %438 = vmatpush1.msra.mxu0 %v235
    %439 = vmatprep.subr.mxu0 0.0
    %440 = vmatpush1.msra.mxu0 %v234
    %441 = vmatprep.subr.mxu0 0.0
    %442 = vmatpush2.msra.mxu0 0.0
    %443 = vmatprep.subr.mxu0 0.0
    %444 = vmatpush2.msra.mxu0 0.0
    %445 = vmatprep.subr.mxu0 0.0
    %446 = vmatpush2.msra.mxu0 0.0
    %447 = vmatprep.subr.mxu0 0.0
    %448 = vmatpush2.msra.mxu0 0.0
    %449 = vmatprep.subr.mxu0 0.0
    %450 = vmatpush2.msra.mxu0 0.0
    %451 = vmatprep.subr.mxu0 0.0
    %452 = vmatpush2.msra.mxu0 0.0
    %453 = vmatprep.subr.mxu0 0.0
    %454 = vmatpush2.msra.mxu0 0.0
    %455 = vmatprep.subr.mxu0 0.0
    %456 = vmatpush2.msra.mxu0 0.0
    %457 = vmatprep.subr.mxu0 0.0
    %458 = vmatpush2.msra.mxu0 0.0
    %459 = vmatprep.subr.mxu0 0.0
    %460 = vmatpush2.msra.mxu0 0.0
    %461 = vmatprep.subr.mxu0 0.0
    %462 = vmatpush2.msra.mxu0 0.0
    %463 = vmatprep.subr.mxu0 0.0
    %464 = vmatpush2.msra.mxu0 0.0
    %465 = vmatprep.subr.mxu0 0.0
    %466 = vmatpush2.msra.mxu0 0.0
    %467 = vmatprep.subr.mxu0 0.0
    %468 = vmatpush2.msra.mxu0 0.0
    %469 = vmatprep.subr.mxu0 0.0
    %470 = vmatpush2.msra.mxu0 0.0
    %471 = vmatprep.subr.mxu0 0.0
    %472 = vmatpush2.msra.mxu0 0.0
    %473 = vmatprep.mubr.f32.mxu0 0.0
    %474 = vmatmul.mubr.f32.gmra.mxu0 %v386
    %v475 = vpop.f32.mrf.mxu0
    %v476 = vadd.f32 %v347, %v475
    %v477 = vpop.f32.mrf.mxu0
    %478 = vmatprep.mubr.f32.mxu0 0.0
    %479 = vmatmul.mubr.f32.gmra.mxu0 %v389
    %v480 = vpop.f32.mrf.mxu0
    %v481 = vadd.f32 %v352, %v480
    %v482 = vpop.f32.mrf.mxu0
    %483 = vmatprep.mubr.f32.mxu0 0.0
    %484 = vmatmul.mubr.f32.gmra.mxu0 %v392
    %v485 = vpop.f32.mrf.mxu0
    %v486 = vadd.f32 %v357, %v485
    %v487 = vpop.f32.mrf.mxu0
    %488 = vmatprep.mubr.f32.mxu0 0.0
    %489 = vmatmul.mubr.f32.gmra.mxu0 %v395
    %v490 = vpop.f32.mrf.mxu0
    %v491 = vadd.f32 %v362, %v490
    %v492 = vpop.f32.mrf.mxu0
    %493 = vmatprep.mubr.f32.mxu0 0.0
    %494 = vmatmul.mubr.f32.gmra.mxu0 %v398
    %v495 = vpop.f32.mrf.mxu0
    %v496 = vadd.f32 %v367, %v495
    %v497 = vpop.f32.mrf.mxu0
    %498 = vmatprep.mubr.f32.mxu0 0.0
    %499 = vmatmul.mubr.f32.gmra.mxu0 %v401
    %v500 = vpop.f32.mrf.mxu0
    %v501 = vadd.f32 %v372, %v500
    %v502 = vpop.f32.mrf.mxu0
    %503 = vmatprep.mubr.f32.mxu0 0.0
    %504 = vmatmul.mubr.f32.gmra.mxu0 %v404
    %v505 = vpop.f32.mrf.mxu0
    %v506 = vadd.f32 %v377, %v505
    %v507 = vpop.f32.mrf.mxu0
    %508 = vmatprep.mubr.f32.mxu0 0.0
    %509 = vmatmul.mubr.f32.gmra.mxu0 %v407
    %v510 = vpop.f32.mrf.mxu0
    %v511 = vadd.f32 %v382, %v510
    %v512 = vpop.f32.mrf.mxu0
    %513 = vdwg.mxu0
    %v514 = vld [vmem:[%s4] sm:$0x1]
    %v516 = vlaneseq
    %v517 = vshrl.u32 %v516, 7
    %v518 = vsub.s32 0, %v517
    %v519 = vrot.slane %v514, %v518
    %v521 = vadd.f32 %v476, %v519
    %v522 = vadd.f32 %v481, %v519
    %v523 = vadd.f32 %v486, %v519
    %v524 = vadd.f32 %v491, %v519
    %v525 = vadd.f32 %v496, %v519
    %v526 = vadd.f32 %v501, %v519
    %v527 = vadd.f32 %v506, %v519
    %v528 = vadd.f32 %v511, %v519
    %529 = vst [vmem:[#allocation10] sm:$0xff] %v521
    %530 = vst [vmem:[#allocation10 + $0x8] sm:$0xff] %v522
    %531 = vst [vmem:[#allocation10 + $0x10] sm:$0xff] %v523
    %532 = vst [vmem:[#allocation10 + $0x18] sm:$0xff] %v524
    %533 = vst [vmem:[#allocation10 + $0x20] sm:$0xff] %v525
    %534 = vst [vmem:[#allocation10 + $0x28] sm:$0xff] %v526
    %535 = vst [vmem:[#allocation10 + $0x30] sm:$0xff] %v527
    %536 = vst [vmem:[#allocation10 + $0x38] sm:$0xff] %v528
    // Predicated region
    $region38: #{tpu_custom_call.1} parent=1 // pred_check
      _
    $region39: #{tpu_custom_call.1} parent=1 // pred_check_branch
      %538 = sbr.rel (0) target = $region41
    $region40: #{tpu_custom_call.1} parent=1 // pred_region
      %s540 = ssub.s32 1024, 1024
      %541 = vsyncadd [#allocation4], %s540
      %s542 = sshll.u32 [#allocation10], 4
      %s543 = int_to_ptr.vmem [resolvable:$true] %s542
      %548 = dma.vmem_to_hbm [thread:$0]  %s543, 1024, %s5, [#allocation4], 128, 128, 8
    $region41: #{tpu_custom_call.1} parent=1 // pred_fallthru
      _
    // Predicated region
    $region42: #{tpu_custom_call.1} parent=1 // pred_check
      _
    $region43: #{tpu_custom_call.1} parent=1 // pred_check_branch
      %550 = sbr.rel (0) target = $region45
    $region44: #{tpu_custom_call.1} parent=1 // pred_region
      %551 = dma.done [#allocation4], 1024
    $region45: #{tpu_custom_call.1} parent=1 // pred_fallthru
      _
    %552 = vsyncpa [#allocation3], 1
    %553 = vsyncpa [#allocation6], 1
    %554 = vsyncpa [#allocation9], 1
    %555 = vsyncpa [#allocation4], 1

</llo_original>
